<compile_context>
chip_gen: v5e
topology: v5e:2x2
jax: 0.10.0
libtpu: 0.0.40
codegen_flags: <defaults>
</compile_context>

<pallas_src>
import numpy as np
import jax
import jax.numpy as jnp
from jax.experimental import pallas as pl
from jax.experimental.pallas import tpu as pltpu


# ---------------------------------------------------------------------------
# Kernel
# ---------------------------------------------------------------------------
def _pe2d_kernel(xpad_ref, tmpl_ref, out_ref):
    """Writes one lane-dense (TX, TY*2C) slab of the output.

    xpad_ref : (1, TX, 2C)    f32  per-row group [emb_x | zeros] for this batch/x-tile
    tmpl_ref : (1, 1, TY*2C)  f32  per-batch template [zeros | emb_y[j]] per j-group
    out_ref  : (1, TX, TY*2C) out  output slab (Y folded into lanes)
    """
    xp = xpad_ref[0]                     # (TX, 2C)
    c2 = xp.shape[-1]
    ty = out_ref.shape[-1] // c2
    # Replicate the per-row [emb_x | 0] group TY times along the lane axis.
    rep = xp if ty == 1 else jnp.concatenate([xp] * ty, axis=-1)   # (TX, TY*2C)
    # Add per-batch template carrying emb_y in the upper half of each 2C group,
    # then one full-width (unmasked) store.
    out_ref[0] = (rep + tmpl_ref[0]).astype(out_ref.dtype)


# ---------------------------------------------------------------------------
# Tile selection helpers
# ---------------------------------------------------------------------------
def _pick_ty(y, c2, max_lanes=4096, max_groups=64):
    """Largest divisor ty of y with ty*c2 a multiple of 128 (lane-aligned block),
    bounded in lane width / concat fan-in.  Falls back to the full axis, which is
    always a legal block shape."""
    best = None
    for d in range(1, y + 1):
        if y % d:
            continue
        if d > max_groups or d * c2 > max_lanes:
            continue
        if (d * c2) % 128 == 0:
            best = d
    return best if best is not None else y


def _pick_tx(x, l_tile, itemsize, target_bytes=2 * 1024 * 1024):
    """Largest multiple-of-8 divisor of x keeping the output tile <= target_bytes;
    falls back to the full axis (always legal)."""
    max_rows = max(1, target_bytes // max(1, l_tile * itemsize))
    if x <= max_rows:
        return x
    best = None
    for d in range(8, min(x, max_rows) + 1, 8):
        if x % d == 0:
            best = d
    return best if best is not None else x


# ---------------------------------------------------------------------------
# Module wrapper
# ---------------------------------------------------------------------------
class PositionalEncoding2D:
    def __init__(self, channels):
        self.org_channels = channels
        channels_i = int(np.ceil(channels / 4) * 2)
        self.channels = channels_i
        self.inv_freq = jnp.asarray(
            1.0 / 10000 ** (np.arange(0, channels_i, 2, dtype=np.float32) / channels_i)
        )  # (C/2,)

    def __call__(self, coords):
        if coords.ndim != 4:
            raise RuntimeError("The input tensor has to be 4d!")
        B, _, X, Y = coords.shape
        C = self.channels
        C2 = 2 * C
        if X != Y:
            # The reference module's in-place broadcast only works when x == y.
            raise RuntimeError("PositionalEncoding2D reference semantics require x == y")

        out_dtype = coords.dtype
        L = Y * C2

        # ---- tiny O((X+Y)*C) prep in XLA; the kernel does the O(X*Y*2C) writeback ----
        pos_x = coords[:, 0, 0, :].astype(jnp.float32)          # (B, Y)
        pos_y = coords[:, 1, :, 0].astype(jnp.float32)          # (B, X)
        sin_x = pos_x[..., None] * self.inv_freq                # (B, Y, C/2)
        sin_y = pos_y[..., None] * self.inv_freq                # (B, X, C/2)

        def get_emb(s):  # interleave sin/cos -> (..., C)
            e = jnp.stack([jnp.sin(s), jnp.cos(s)], axis=-1)
            return e.reshape(*s.shape[:-1], -1)

        emb_x = get_emb(sin_x)                                  # (B, X, C)  (X == Y)
        emb_y = get_emb(sin_y)                                  # (B, Y, C)

        xpad = jnp.concatenate([emb_x, jnp.zeros_like(emb_x)], axis=-1)        # (B, X, 2C)
        tmpl = jnp.concatenate([jnp.zeros_like(emb_y), emb_y], axis=-1)        # (B, Y, 2C)
        tmpl = tmpl.reshape(B, 1, L)                                           # (B, 1, Y*2C)

        # ---- tiling ----
        itemsize = int(np.dtype(out_dtype).itemsize)
        ty = _pick_ty(Y, C2)
        l_tile = ty * C2
        tx = _pick_tx(X, l_tile, max(itemsize, 4))
        grid = (B, X // tx, Y // ty)

        bytes_accessed = (
            B * X * L * itemsize            # output writeback (dominant)
            + B * X * C2 * 4                # xpad
            + B * L * 4                     # template
        )

        out_flat = pl.pallas_call(
            _pe2d_kernel,
            out_shape=jax.ShapeDtypeStruct((B, X, L), out_dtype),
            grid=grid,
            in_specs=[
                pl.BlockSpec((1, tx, C2), lambda b, xt, yt: (b, xt, 0)),
                pl.BlockSpec((1, 1, l_tile), lambda b, xt, yt: (b, 0, yt)),
            ],
            out_specs=pl.BlockSpec((1, tx, l_tile), lambda b, xt, yt: (b, xt, yt)),
            compiler_params=pltpu.CompilerParams(
                dimension_semantics=("parallel", "parallel", "parallel")),
            cost_estimate=pl.CostEstimate(
                flops=B * X * L, transcendentals=0, bytes_accessed=bytes_accessed),
        )(xpad, tmpl)

        return out_flat.reshape(B, X, Y, C2)


# ---------------------------------------------------------------------------
# Pure-numpy port of the PyTorch forward (source of truth for the test)
# ---------------------------------------------------------------------------
def _reference_numpy(coords, channels):
    coords = np.asarray(coords)
    B, _, X, Y = coords.shape
    C = int(np.ceil(channels / 4) * 2)
    inv = (1.0 / 10000 ** (np.arange(0, C, 2).astype(np.float32) / C)).astype(np.float32)
    pos_x = coords[:, 0, 0, :].astype(np.float32)  # (B, Y)
    pos_y = coords[:, 1, :, 0].astype(np.float32)  # (B, X)
    sx = np.einsum("bi,j->bij", pos_x, inv)
    sy = np.einsum("bi,j->bij", pos_y, inv)

    def get_emb(s):
        e = np.stack((np.sin(s), np.cos(s)), axis=-1)
        return e.reshape(*s.shape[:-1], -1)

    ex = get_emb(sx)[:, :, None, :]  # (B, Y, 1, C)
    ey = get_emb(sy)[:, None, :, :]  # (B, 1, X, C)
    emb = np.zeros((B, X, Y, 2 * C), dtype=coords.dtype)
    emb[:, :, :, :C] = ex
    emb[:, :, :, C:] = ey
    return emb


if __name__ == "__main__":
    key = jax.random.PRNGKey(0)
    B, NC, X, Y = 2, 4, 16, 16        # coords: (batch, num_coords, x, y)
    CH = 32                           # org channels -> internal C = 16, output last dim 32

    coords = jax.random.normal(key, (B, NC, X, Y), dtype=jnp.float32) * 3.0

    pe = PositionalEncoding2D(CH)
    out = pe(coords)
    out = jax.block_until_ready(out)

    ref = _reference_numpy(np.asarray(coords), CH)
    np.testing.assert_allclose(np.asarray(out), ref, rtol=1e-5, atol=1e-5)

    print("KERNEL_OK")
</pallas_src>

<mosaic_0001>
module attributes {stable_mosaic.version = 11 : i64} {
  func.func @_pe2d_kernel(%arg0: i32, %arg1: i32, %arg2: i32, %arg3: memref<1x16x32xf32, #tpu.memory_space<vmem>>, %arg4: memref<1x1x512xf32, #tpu.memory_space<vmem>>, %arg5: memref<1x16x512xf32, #tpu.memory_space<vmem>>) attributes {dimension_semantics = [#tpu.dimension_semantics<parallel>, #tpu.dimension_semantics<parallel>, #tpu.dimension_semantics<parallel>], iteration_bounds = array<i64: 2, 1, 1>, scalar_prefetch = 0 : i64, scratch_operands = 0 : i64, tpu.core_type = #tpu.core_type<tc>, window_params = [{transform_indices = @transform_0, window_bounds = array<i64: 1, 16, 32>}, {transform_indices = @transform_1, window_bounds = array<i64: 1, 1, 512>}, {transform_indices = @transform_2, window_bounds = array<i64: 1, 16, 512>}]} {
    %c0 = arith.constant 0 : index
    %c0_0 = arith.constant 0 : index
    %c0_1 = arith.constant 0 : index
    %0 = vector.load %arg3[%c0, %c0_0, %c0_1] : memref<1x16x32xf32, #tpu.memory_space<vmem>>, vector<1x16x32xf32>
    %1 = vector.shape_cast %0 : vector<1x16x32xf32> to vector<16x32xf32>
    %2 = tpu.concatenate %1, %1, %1, %1, %1, %1, %1, %1, %1, %1, %1, %1, %1, %1, %1, %1 in 1 : vector<16x32xf32>, vector<16x32xf32>, vector<16x32xf32>, vector<16x32xf32>, vector<16x32xf32>, vector<16x32xf32>, vector<16x32xf32>, vector<16x32xf32>, vector<16x32xf32>, vector<16x32xf32>, vector<16x32xf32>, vector<16x32xf32>, vector<16x32xf32>, vector<16x32xf32>, vector<16x32xf32>, vector<16x32xf32> -> vector<16x512xf32>
    %c0_2 = arith.constant 0 : index
    %c0_3 = arith.constant 0 : index
    %c0_4 = arith.constant 0 : index
    %3 = vector.load %arg4[%c0_2, %c0_3, %c0_4] : memref<1x1x512xf32, #tpu.memory_space<vmem>>, vector<1x1x512xf32>
    %4 = vector.shape_cast %3 : vector<1x1x512xf32> to vector<1x512xf32>
    %5 = vector.broadcast %4 : vector<1x512xf32> to vector<16x512xf32>
    %6 = arith.addf %2, %5 : vector<16x512xf32>
    %c0_5 = arith.constant 0 : index
    %c0_6 = arith.constant 0 : index
    %c0_7 = arith.constant 0 : index
    %7 = vector.load %arg5[%c0_5, %c0_6, %c0_7] : memref<1x16x512xf32, #tpu.memory_space<vmem>>, vector<1x16x512xf32>
    %8 = vector.shape_cast %7 : vector<1x16x512xf32> to vector<16x512xf32>
    %9 = vector.shape_cast %6 : vector<16x512xf32> to vector<1x16x512xf32>
    tpu.vector_store %arg5[%c0_5, %c0_6, %c0_7], %9 {strides = array<i32>} : memref<1x16x512xf32, #tpu.memory_space<vmem>>, vector<1x16x512xf32>,
    return
  }
  func.func @transform_0(%arg0: i32, %arg1: i32, %arg2: i32) -> (i32, i32, i32) {
    %c0_i32 = arith.constant 0 : i32
    %c0_i32_0 = arith.constant 0 : i32
    return %arg0, %arg1, %c0_i32 : i32, i32, i32
  }
  func.func @transform_1(%arg0: i32, %arg1: i32, %arg2: i32) -> (i32, i32, i32) {
    %c0_i32 = arith.constant 0 : i32
    %c0_i32_0 = arith.constant 0 : i32
    return %arg0, %c0_i32, %arg2 : i32, i32, i32
  }
  func.func @transform_2(%arg0: i32, %arg1: i32, %arg2: i32) -> (i32, i32, i32) {
    %c0_i32 = arith.constant 0 : i32
    return %arg0, %arg1, %arg2 : i32, i32, i32
  }
}

</mosaic_0001>

<llo_original>
// kernel: tpu_custom_call.1
$region0: #{tpu_custom_call.1}
  #allocation0 [shape = 'u32[]', space=smem, size = 0x4, offset = 0x4, fixed_abs, tag = 'smem constant byte address 0x4 - core index']
  #allocation1 [shape = 'u32[72,128]{1,0:T(1,128)}', space=vmem, size = 0x9000, scoped, tag = 'internal scratch']
  %s0 = inlined_call_operand.hbm [shape: f32[2,16,32], index: 0, kind: input, shape index: {}]
  %s1 = inlined_call_operand.hbm [shape: f32[2,1,512], index: 1, kind: input, shape index: {}]
  %s2 = inlined_call_operand.hbm [shape: f32[2,16,512], index: 2, kind: output, shape index: {}]
  %s3 = sld [smem:[#allocation0]]
  $region49: #{tpu_custom_call.1} parent=0
    _
  %s5 = ssub.s32 1, %s3
  %s6 = scalar_select 0, %s5, %s3
  $region1: #{tpu_custom_call.1} parent=0
    #allocation2 [shape = 'u8[16384]{0}', space=vmem, size = 0x4000, scoped, tag = 'input window, operand 0']
    #allocation3 [shape = 's32[2]{0}', space=sflag, size = 0x8, scoped, tag = 'scoped memory for tpu_custom_call.1']
    #allocation4 [shape = 's32[2]{0}', space=sflag, size = 0x8, scoped, tag = 'scoped memory for tpu_custom_call.1']
    #allocation5 [shape = 'u8[4096]{0}', space=vmem, size = 0x1000, scoped, tag = 'input window, operand 1']
    #allocation6 [shape = 's32[2]{0}', space=sflag, size = 0x8, scoped, tag = 'scoped memory for tpu_custom_call.1']
    #allocation7 [shape = 'u8[65536]{0}', space=vmem, size = 0x10000, scoped, tag = 'output window, operand 0']
    %7 = vsyncpa [#allocation3], 0
    %s8 = scalar_lea.sflag [#allocation3], 1
    %9 = vsyncpa %s8, 0
    %10 = vsyncpa [#allocation6], 0
    %s11 = scalar_lea.sflag [#allocation6], 1
    %12 = vsyncpa %s11, 0
    %13 = vsyncpa [#allocation4], 0
    %s14 = scalar_lea.sflag [#allocation4], 1
    %15 = vsyncpa %s14, 0
    loop: start=0, step=1, limit=4
    $region2: #{tpu_custom_call.1} parent=1 // loop_pre_header
      _
    $region3: #{tpu_custom_call.1} parent=1 // loop_header
      %s17 = sphi 0, %s21
      %p18 = scmp.ge.s32.totalorder %s17, 4
      %s24 = sphi 0, %s43
      %s25 = sphi 0, %s39
      %s26 = sphi 0, %s35
      %s27 = sphi 0, %s24
      %s28 = sphi 0, %s25
      %s29 = sphi 0, %s26
      %s30 = sphi 0, %s27
      %s31 = sphi 0, %s28
      %s32 = sphi 0, %s29
      %s48 = sphi 0, %s50
      %s51 = sphi 0, %s48
      %s52 = sphi 0, %s51
      %s68 = sphi 0, %s52
      %s76 = sphi 0, %s78
      %s79 = sphi 0, %s76
      %s80 = sphi 0, %s79
      %s96 = sphi 0, %s80
      %s106 = sphi 0, %s108
      %s109 = sphi 0, %s106
      %s110 = sphi 0, %s109
      %s126 = sphi 0, %s110
    $region4: #{tpu_custom_call.1} parent=1 // loop_header_branch
      %20 = sbr.rel (%p18) target = $region8
    $region5: #{tpu_custom_call.1} parent=1 // loop_body
      %s22 = ssub.s32 %s17, 1
      %s23 = ssub.s32 %s17, 2
      %s33 = sadd.s32 1, %s26
      %p34 = scmp.ge.s32.totalorder %s33, 1
      %s35 = scalar_select %p34, 0, %s33
      %s36 = sadd.s32 1, %s25
      %s37 = scalar_select %p34, %s36, %s25
      %p38 = scmp.ge.s32.totalorder %s37, 1
      %s39 = scalar_select %p38, 0, %s37
      %s40 = sadd.s32 1, %s24
      %s41 = scalar_select %p38, %s40, %s24
      %p42 = scmp.ge.s32.totalorder %s41, 2
      %s43 = scalar_select %p42, 0, %s41
      %s44 = ssub.s32 %s24, %s43
      %s45 = ssub.s32 %s25, %s39
      %s46 = sor.u32 %s44, %s45
      %p47 = scmp.eq.s32.totalorder %s46, 0
      %s49 = sadd.s32 %s48, 1
      %s50 = scalar_select %p47, %s48, %s49
      %p53 = pneg %p47
      %p54 = scmp.eq.s32.totalorder %s17, 1
      %p55 = por %p53, %p54
      %p56 = scmp.ne.s32.totalorder %s48, %s51
      %p57 = scmp.eq.s32.totalorder %s17, 0
      %p58 = por %p56, %p57
      %p59 = scmp.ne.s32.totalorder %s48, %s51
      %p60 = scmp.eq.s32.totalorder %s22, 1
      %p61 = por %p59, %p60
      %p62 = scmp.ne.s32.totalorder %s51, %s52
      %p63 = scmp.eq.s32.totalorder %s22, 0
      %p64 = por %p62, %p63
      %p65 = scmp.ne.s32.totalorder %s51, %s52
      %p66 = scmp.eq.s32.totalorder %s23, 1
      %p67 = por %p65, %p66
      %p69 = scmp.ne.s32.totalorder %s52, %s68
      %p70 = scmp.eq.s32.totalorder %s23, 0
      %p71 = por %p69, %p70
      %s72 = ssub.s32 %s24, %s43
      %s73 = ssub.s32 %s26, %s35
      %s74 = sor.u32 %s72, %s73
      %p75 = scmp.eq.s32.totalorder %s74, 0
      %s77 = sadd.s32 %s76, 1
      %s78 = scalar_select %p75, %s76, %s77
      %p81 = pneg %p75
      %p82 = scmp.eq.s32.totalorder %s17, 1
      %p83 = por %p81, %p82
      %p84 = scmp.ne.s32.totalorder %s76, %s79
      %p85 = scmp.eq.s32.totalorder %s17, 0
      %p86 = por %p84, %p85
      %p87 = scmp.ne.s32.totalorder %s76, %s79
      %p88 = scmp.eq.s32.totalorder %s22, 1
      %p89 = por %p87, %p88
      %p90 = scmp.ne.s32.totalorder %s79, %s80
      %p91 = scmp.eq.s32.totalorder %s22, 0
      %p92 = por %p90, %p91
      %p93 = scmp.ne.s32.totalorder %s79, %s80
      %p94 = scmp.eq.s32.totalorder %s23, 1
      %p95 = por %p93, %p94
      %p97 = scmp.ne.s32.totalorder %s80, %s96
      %p98 = scmp.eq.s32.totalorder %s23, 0
      %p99 = por %p97, %p98
      %s100 = ssub.s32 %s24, %s43
      %s101 = ssub.s32 %s25, %s39
      %s102 = sor.u32 %s100, %s101
      %s103 = ssub.s32 %s26, %s35
      %s104 = sor.u32 %s102, %s103
      %p105 = scmp.eq.s32.totalorder %s104, 0
      %s107 = sadd.s32 %s106, 1
      %s108 = scalar_select %p105, %s106, %s107
      %p111 = pneg %p105
      %p112 = scmp.eq.s32.totalorder %s17, 1
      %p113 = por %p111, %p112
      %p114 = scmp.ne.s32.totalorder %s106, %s109
      %p115 = scmp.eq.s32.totalorder %s17, 0
      %p116 = por %p114, %p115
      %p117 = scmp.ne.s32.totalorder %s106, %s109
      %p118 = scmp.eq.s32.totalorder %s22, 1
      %p119 = por %p117, %p118
      %p120 = scmp.ne.s32.totalorder %s109, %s110
      %p121 = scmp.eq.s32.totalorder %s22, 0
      %p122 = por %p120, %p121
      %p123 = scmp.ne.s32.totalorder %s109, %s110
      %p124 = scmp.eq.s32.totalorder %s23, 1
      %p125 = por %p123, %p124
      %p127 = scmp.ne.s32.totalorder %s110, %s126
      %p128 = scmp.eq.s32.totalorder %s23, 0
      %p129 = por %p127, %p128
      %p130 = scmp.le.s32.totalorder 1, %s17
      %p131 = scmp.lt.s32.totalorder %s17, 3
      %p132 = pnand %p130, %p131
      %p133 = pneg %p132
      // Predicated region
      $region9: #{tpu_custom_call.1} parent=5 // pred_check
        _
      $region10: #{tpu_custom_call.1} parent=5 // pred_check_branch
        %135 = sbr.rel (%p132) target = $region12
      $region11: #{tpu_custom_call.1} parent=5 // pred_region
        %s136 = ssub.s32 %s17, 1
      $region12: #{tpu_custom_call.1} parent=5 // pred_fallthru
        _
      %p137 = scmp.lt.s32.totalorder %s17, 2
      // Predicated region
      $region13: #{tpu_custom_call.1} parent=5 // pred_check
        %p138 = pneg %p137
      $region14: #{tpu_custom_call.1} parent=5 // pred_check_branch
        %140 = sbr.rel (%p138) target = $region16
      $region15: #{tpu_custom_call.1} parent=5 // pred_region
        // Predicated region
        $region17: #{tpu_custom_call.1} parent=15 // pred_check
          %p141 = pneg %p58
        $region18: #{tpu_custom_call.1} parent=15 // pred_check_branch
          %143 = sbr.rel (%p141) target = $region20
        $region19: #{tpu_custom_call.1} parent=15 // pred_region
          %s144 = sand.u32 %s48, 1
          %s145 = scalar_lea.sflag [#allocation3], %s144
          %s146 = sand.u32 %s48, 1
          %s147 = smul.addr %s146, 16
          %s148 = scalar_lea.vmem [#allocation2], %s147
          %s149 = smul.u32 2, %s25
          %151 = vsyncadd %s145, 0
          %s152 = smul.addr %s24, 2
          %s153 = sadd.s32 %s149, %s152
          %s154 = smul.addr %s153, 8
          %s155 = scalar_lea.hbm %s0, %s154
          %s156 = sshll.u32 %s155, 4
          %s157 = int_to_ptr.hbm [resolvable:$true] %s156
          %s158 = sshll.u32 %s148, 4
          %s159 = int_to_ptr.vmem [resolvable:$true] %s158
          %164 = dma.hbm_to_vmem [thread:$0]  %s157, 256, %s159, %s145, 128, 128, 8
        $region20: #{tpu_custom_call.1} parent=15 // pred_fallthru
          _
        // Predicated region
        $region21: #{tpu_custom_call.1} parent=15 // pred_check
          %p165 = pneg %p86
        $region22: #{tpu_custom_call.1} parent=15 // pred_check_branch
          %167 = sbr.rel (%p165) target = $region24
        $region23: #{tpu_custom_call.1} parent=15 // pred_region
          %s168 = sand.u32 %s76, 1
          %s169 = scalar_lea.sflag [#allocation6], %s168
          %s170 = sand.u32 %s76, 1
          %s171 = smul.addr %s170, 4
          %s172 = scalar_lea.vmem [#allocation5], %s171
          %s173 = smul.u32 4, %s26
          %175 = vsyncadd %s169, 0
          %s176 = smul.addr %s24, 4
          %s177 = sadd.s32 %s173, %s176
          %s178 = scalar_lea.hbm %s1, %s177
          %s180 = sshll.u32 %s178, 4
          %s181 = int_to_ptr.hbm [resolvable:$true] %s180
          %s182 = sshll.u32 %s172, 4
          %s183 = int_to_ptr.vmem [resolvable:$true] %s182
          %185 = dma.hbm_to_vmem [thread:$0]  %s181, 64, %s183, %s169
        $region24: #{tpu_custom_call.1} parent=15 // pred_fallthru
          _
      $region16: #{tpu_custom_call.1} parent=5 // pred_fallthru
        _
      %p186 = scmp.le.s32.totalorder 1, %s17
      %p187 = scmp.lt.s32.totalorder %s17, 3
      %p188 = pnand %p186, %p187
      %p189 = pneg %p188
      // Predicated region
      $region25: #{tpu_custom_call.1} parent=5 // pred_check
        _
      $region26: #{tpu_custom_call.1} parent=5 // pred_check_branch
        %191 = sbr.rel (%p188) target = $region28
      $region27: #{tpu_custom_call.1} parent=5 // pred_region
        %s192 = ssub.s32 %s17, 1
        %s193 = sand.u32 %s51, 1
        %s194 = scalar_lea.sflag [#allocation3], %s193
        %s195 = sand.u32 %s51, 1
        %s196 = smul.addr %s195, 16
        %s197 = scalar_lea.vmem [#allocation2], %s196
        // Predicated region
        $region29: #{tpu_custom_call.1} parent=27 // pred_check
          %p198 = pneg %p64
        $region30: #{tpu_custom_call.1} parent=27 // pred_check_branch
          %200 = sbr.rel (%p198) target = $region32
        $region31: #{tpu_custom_call.1} parent=27 // pred_region
          %202 = dma.done %s194, 256
        $region32: #{tpu_custom_call.1} parent=27 // pred_fallthru
          _
        %s203 = sand.u32 %s79, 1
        %s204 = scalar_lea.sflag [#allocation6], %s203
        %s205 = sand.u32 %s79, 1
        %s206 = smul.addr %s205, 4
        %s207 = scalar_lea.vmem [#allocation5], %s206
        // Predicated region
        $region33: #{tpu_custom_call.1} parent=27 // pred_check
          %p208 = pneg %p92
        $region34: #{tpu_custom_call.1} parent=27 // pred_check_branch
          %210 = sbr.rel (%p208) target = $region36
        $region35: #{tpu_custom_call.1} parent=27 // pred_region
          %212 = dma.done %s204, 64
        $region36: #{tpu_custom_call.1} parent=27 // pred_fallthru
          _
        %s213 = sand.u32 %s51, 1
        %s214 = scalar_lea.sflag [#allocation3], %s213
        %s215 = sand.u32 %s51, 1
        %s216 = smul.addr %s215, 16
        %s217 = scalar_lea.vmem [#allocation2], %s216
        %p218 = pneg %p64
        %p219 = pneg %p61
        %s220 = sand.u32 %s79, 1
        %s221 = scalar_lea.sflag [#allocation6], %s220
        %s222 = sand.u32 %s79, 1
        %s223 = smul.addr %s222, 4
        %s224 = scalar_lea.vmem [#allocation5], %s223
        %p225 = pneg %p92
        %p226 = pneg %p89
        %p227 = pneg %p122
        %p228 = pneg %p119
        %s229 = sand.u32 %s109, 1
        %s230 = scalar_lea.sflag [#allocation4], %s229
        %s231 = sand.u32 %s109, 1
        %s232 = smul.addr %s231, 64
        %s233 = scalar_lea.vmem [#allocation7], %s232
        %s234 = smul.u32 2, %s28
        %s235 = smul.u32 4, %s29
        %s236 = smul.u32 2, %s28
        %s237 = smul.u32 4, %s29
        %v238 = vld [vmem:[%s197] sm:$0xff]
        %v239 = vld [vmem:[%s197 + $0x8] sm:$0xff]
        %242 = vrot.lane.b32.xlu0 %v238, 32
        %v243 = vpop.permute.xlu0 %242
        %244 = vrot.lane.b32.xlu0 %v239, 32
        %v245 = vpop.permute.xlu0 %244
        %248 = vrot.lane.b32.xlu0 %v238, 64
        %v249 = vpop.permute.xlu0 %248
        %250 = vrot.lane.b32.xlu0 %v239, 64
        %v251 = vpop.permute.xlu0 %250
        %254 = vrot.lane.b32.xlu0 %v238, 96
        %v255 = vpop.permute.xlu0 %254
        %256 = vrot.lane.b32.xlu0 %v239, 96
        %v257 = vpop.permute.xlu0 %256
        %vm260 = vcmask 261120
        %v261 = vsel %vm260, %v238, %v243
        %v262 = vsel %vm260, %v239, %v245
        %vm263 = vcmask 523264
        %v264 = vsel %vm263, %v261, %v249
        %v265 = vsel %vm263, %v262, %v251
        %vm266 = vcmask 785408
        %v267 = vsel %vm266, %v264, %v255
        %v268 = vsel %vm266, %v265, %v257
        %v269 = vld [vmem:[%s207] sm:$0xf]
        %v271 = vperm.slane %v269, 0
        %v272 = vperm.slane %v269, 1
        %v273 = vperm.slane %v269, 2
        %v274 = vperm.slane %v269, 3
        %v279 = vadd.f32 %v267, %v271
        %v280 = vadd.f32 %v267, %v272
        %v281 = vadd.f32 %v267, %v273
        %v282 = vadd.f32 %v267, %v274
        %v283 = vadd.f32 %v268, %v271
        %v284 = vadd.f32 %v268, %v272
        %v285 = vadd.f32 %v268, %v273
        %v286 = vadd.f32 %v268, %v274
        %287 = vst [vmem:[%s233] sm:$0xff] %v279
        %288 = vst [vmem:[%s233 + $0x8] sm:$0xff] %v280
        %289 = vst [vmem:[%s233 + $0x10] sm:$0xff] %v281
        %290 = vst [vmem:[%s233 + $0x18] sm:$0xff] %v282
        %291 = vst [vmem:[%s233 + $0x20] sm:$0xff] %v283
        %292 = vst [vmem:[%s233 + $0x28] sm:$0xff] %v284
        %293 = vst [vmem:[%s233 + $0x30] sm:$0xff] %v285
        %294 = vst [vmem:[%s233 + $0x38] sm:$0xff] %v286
        %s295 = sand.u32 %s109, 1
        %s296 = scalar_lea.sflag [#allocation4], %s295
        %s297 = sand.u32 %s109, 1
        %s298 = smul.addr %s297, 64
        %s299 = scalar_lea.vmem [#allocation7], %s298
        // Predicated region
        $region37: #{tpu_custom_call.1} parent=27 // pred_check
          %p300 = pneg %p119
        $region38: #{tpu_custom_call.1} parent=27 // pred_check_branch
          %302 = sbr.rel (%p300) target = $region40
        $region39: #{tpu_custom_call.1} parent=27 // pred_region
          %s303 = smul.u32 2, %s28
          %s304 = smul.u32 4, %s29
          %306 = vsyncadd %s296, 0
          %s307 = smul.addr %s303, 4
          %s308 = sadd.s32 %s304, %s307
          %s309 = smul.addr %s27, 8
          %s310 = sadd.s32 %s308, %s309
          %s311 = smul.addr %s310, 8
          %s312 = scalar_lea.hbm %s2, %s311
          %s313 = sshll.u32 %s299, 4
          %s314 = int_to_ptr.vmem [resolvable:$true] %s313
          %s315 = sshll.u32 %s312, 4
          %s316 = int_to_ptr.hbm [resolvable:$true] %s315
          %321 = dma.vmem_to_hbm [thread:$0]  %s314, 1024, %s316, %s296, 512, 512, 32
        $region40: #{tpu_custom_call.1} parent=27 // pred_fallthru
          _
      $region28: #{tpu_custom_call.1} parent=5 // pred_fallthru
        _
      %p322 = scmp.le.s32.totalorder 2, %s17
      // Predicated region
      $region41: #{tpu_custom_call.1} parent=5 // pred_check
        %p323 = pneg %p322
      $region42: #{tpu_custom_call.1} parent=5 // pred_check_branch
        %325 = sbr.rel (%p323) target = $region44
      $region43: #{tpu_custom_call.1} parent=5 // pred_region
        %s326 = ssub.s32 %s17, 2
        // Predicated region
        $region45: #{tpu_custom_call.1} parent=43 // pred_check
          %p327 = pneg %p125
        $region46: #{tpu_custom_call.1} parent=43 // pred_check_branch
          %329 = sbr.rel (%p327) target = $region48
        $region47: #{tpu_custom_call.1} parent=43 // pred_region
          %s330 = sand.u32 %s110, 1
          %s331 = scalar_lea.sflag [#allocation4], %s330
          %s332 = sand.u32 %s110, 1
          %s333 = smul.addr %s332, 64
          %s334 = scalar_lea.vmem [#allocation7], %s333
          %336 = dma.done %s331, 1024
        $region48: #{tpu_custom_call.1} parent=43 // pred_fallthru
          _
      $region44: #{tpu_custom_call.1} parent=5 // pred_fallthru
        _
    $region6: #{tpu_custom_call.1} parent=1 // loop_footer
      %s21 = sadd.s32 1, %s17
    $region7: #{tpu_custom_call.1} parent=1 // loop_footer_branch
      %16 = sbr.rel target = $region3
    $region8: #{tpu_custom_call.1} parent=1 // loop_exit
      _
    %337 = vsyncpa [#allocation3], 1
    %s338 = scalar_lea.sflag [#allocation3], 1
    %339 = vsyncpa %s338, 1
    %340 = vsyncpa [#allocation6], 1
    %s341 = scalar_lea.sflag [#allocation6], 1
    %342 = vsyncpa %s341, 1
    %343 = vsyncpa [#allocation4], 1
    %s344 = scalar_lea.sflag [#allocation4], 1
    %345 = vsyncpa %s344, 1

</llo_original>
